<compile_context>
chip_gen: v6e
topology: v6e:2x2x1
jax: 0.10.0
libtpu: 0.0.40
codegen_flags: <defaults>
</compile_context>

<pallas_src>
import jax
import jax.numpy as jnp
from jax.experimental import pallas as pl
from jax.experimental.pallas import tpu as pltpu

_TARGET_SUBLANES = 4096  # ~2 MiB per f32 operand buffer after 128-lane padding


def _round_up(x, m):
    return (x + m - 1) // m * m


def keypoint_loss(preds, targets, num_keypoints=8):
    """Masked keypoint MSE: (preds - hm_targets)**2 * vis, per element.

    preds:   (N, M, K*C)        e.g. (N, M, 24)
    targets: (N, M, K*(C+1))    last channel of each keypoint = visibility
    returns: (N, M, K*C)
    """
    N, M, PC = preds.shape
    K = num_keypoints
    assert PC % K == 0, f"preds last dim {PC} not divisible by K={K}"
    C = PC // K
    assert targets.shape == (N, M, K * (C + 1)), (
        f"targets must be (N, M, {K * (C + 1)}), got {targets.shape}")

    # --- adaptive tile selection -------------------------------------------
    itemsize = jnp.dtype(preds.dtype).itemsize
    sub = 8 * max(1, 4 // itemsize)          # sublane packing: 8 f32/16 bf16/32 i8

    if M <= _TARGET_SUBLANES:
        # Whole proposal axis per block; stack image rows to fatten the block.
        tm, grid_m = M, 1
        m_pad = _round_up(M, sub)
        tn = max(1, min(N, _TARGET_SUBLANES // m_pad))
        if N > 1:                            # keep >= 2 grid steps for megacore
            tn = min(tn, pl.cdiv(N, 2))
        grid_n = pl.cdiv(N, tn)
    else:
        # Tile the proposal axis; even split bounds tail waste, OOB writes
        # on the ragged last block are masked by Pallas.
        tn, grid_n = 1, N
        grid_m = pl.cdiv(M, _TARGET_SUBLANES)
        tm = _round_up(pl.cdiv(M, grid_m), sub)
        grid_m = pl.cdiv(M, tm)

    # --- kernel: elementwise, de-interleave done in-register ----------------
    def kernel(p_ref, t_ref, o_ref):
        p = p_ref[...]                       # (tn, tm, K*C)
        t = t_ref[...]                       # (tn, tm, K*(C+1))
        for k in range(K):                   # K small & static -> unrolled
            hm = t[:, :, (C + 1) * k:(C + 1) * k + C]               # (tn, tm, C)
            vis = t[:, :, (C + 1) * k + C:(C + 1) * (k + 1)]        # (tn, tm, 1)
            d = p[:, :, C * k:C * (k + 1)] - hm
            o_ref[:, :, C * k:C * (k + 1)] = d * d * vis

    p_spec = pl.BlockSpec((tn, tm, K * C), lambda n, m: (n, m, 0))
    t_spec = pl.BlockSpec((tn, tm, K * (C + 1)), lambda n, m: (n, m, 0))
    o_spec = pl.BlockSpec((tn, tm, K * C), lambda n, m: (n, m, 0))

    return pl.pallas_call(
        kernel,
        out_shape=jax.ShapeDtypeStruct((N, M, K * C), preds.dtype),
        grid_spec=pltpu.PrefetchScalarGridSpec(
            num_scalar_prefetch=0,
            grid=(grid_n, grid_m),
            in_specs=[p_spec, t_spec],
            out_specs=o_spec,
        ),
        compiler_params=pltpu.CompilerParams(
            dimension_semantics=("parallel", "parallel"),
            vmem_limit_bytes=32 * 1024 * 1024,
        ),
    )(preds, targets)


def keypoint_loss_ref(preds, targets, num_keypoints=8):
    """Pure-JAX reference mirroring the PyTorch forward."""
    N, M = preds.shape[:2]
    K = num_keypoints
    p4 = preds.reshape(N, M, K, -1)
    t4 = targets.reshape(N, M, K, -1)
    vis = t4[..., -1]
    hm_t = t4[..., :-1]
    loss = (p4 - hm_t) ** 2 * vis[..., None]
    return loss.reshape(N, M, -1)


if __name__ == "__main__":
    # Small shapes: N=2 images, M=4 proposals, 8 keypoints,
    # preds last dim = 8*3 = 24, targets last dim = 8*4 = 32.
    N, M, K = 2, 4, 8
    key = jax.random.PRNGKey(0)
    kp, kt, kv = jax.random.split(key, 3)

    preds = jax.random.normal(kp, (N, M, K * 3), dtype=jnp.float32)
    # targets per keypoint: (peak_pos(1), peak_offset(2), vis(1)).
    tgt_vals = jax.random.normal(kt, (N, M, K, 3), dtype=jnp.float32)
    vis = jax.random.bernoulli(kv, 0.7, (N, M, K, 1)).astype(jnp.float32)
    targets = jnp.concatenate([tgt_vals, vis], axis=-1).reshape(N, M, K * 4)

    out = jax.block_until_ready(keypoint_loss(preds, targets))
    ref = keypoint_loss_ref(preds, targets)

    assert out.shape == (N, M, K * 3)
    assert jnp.allclose(out, ref, atol=1e-5, rtol=1e-5), "mismatch vs reference"
    print("KERNEL_OK")
</pallas_src>

<mosaic_0001>
module attributes {stable_mosaic.version = 11 : i64} {
  func.func @kernel(%arg0: i32, %arg1: i32, %arg2: memref<1x4x24xf32, #tpu.memory_space<vmem>>, %arg3: memref<1x4x32xf32, #tpu.memory_space<vmem>>, %arg4: memref<1x4x24xf32, #tpu.memory_space<vmem>>) attributes {dimension_semantics = [#tpu.dimension_semantics<parallel>, #tpu.dimension_semantics<parallel>], iteration_bounds = array<i64: 2, 1>, scalar_prefetch = 0 : i64, scratch_operands = 0 : i64, tpu.core_type = #tpu.core_type<tc>, window_params = [{transform_indices = @transform_0, window_bounds = array<i64: 1, 4, 24>}, {transform_indices = @transform_1, window_bounds = array<i64: 1, 4, 32>}, {transform_indices = @transform_2, window_bounds = array<i64: 1, 4, 24>}]} {
    %c0 = arith.constant 0 : index
    %c0_0 = arith.constant 0 : index
    %c0_1 = arith.constant 0 : index
    %0 = vector.load %arg2[%c0, %c0_0, %c0_1] : memref<1x4x24xf32, #tpu.memory_space<vmem>>, vector<1x4x24xf32>
    %c0_2 = arith.constant 0 : index
    %c0_3 = arith.constant 0 : index
    %c0_4 = arith.constant 0 : index
    %1 = vector.load %arg3[%c0_2, %c0_3, %c0_4] : memref<1x4x32xf32, #tpu.memory_space<vmem>>, vector<1x4x32xf32>
    %2 = vector.extract_strided_slice %1 {offsets = [0, 0, 0], sizes = [1, 4, 3], strides = [1, 1, 1]} : vector<1x4x32xf32> to vector<1x4x3xf32>
    %3 = vector.extract_strided_slice %1 {offsets = [0, 0, 3], sizes = [1, 4, 1], strides = [1, 1, 1]} : vector<1x4x32xf32> to vector<1x4x1xf32>
    %4 = vector.extract_strided_slice %0 {offsets = [0, 0, 0], sizes = [1, 4, 3], strides = [1, 1, 1]} : vector<1x4x24xf32> to vector<1x4x3xf32>
    %5 = arith.subf %4, %2 : vector<1x4x3xf32>
    %6 = arith.mulf %5, %5 : vector<1x4x3xf32>
    %7 = vector.broadcast %3 : vector<1x4x1xf32> to vector<1x4x3xf32>
    %8 = arith.mulf %6, %7 : vector<1x4x3xf32>
    %c0_5 = arith.constant 0 : index
    %c0_6 = arith.constant 0 : index
    %c0_7 = arith.constant 0 : index
    %9 = vector.load %arg4[%c0_5, %c0_6, %c0_7] : memref<1x4x24xf32, #tpu.memory_space<vmem>>, vector<1x4x3xf32>
    tpu.vector_store %arg4[%c0_5, %c0_6, %c0_7], %8 {strides = array<i32>} : memref<1x4x24xf32, #tpu.memory_space<vmem>>, vector<1x4x3xf32>,
    %10 = vector.extract_strided_slice %1 {offsets = [0, 0, 4], sizes = [1, 4, 3], strides = [1, 1, 1]} : vector<1x4x32xf32> to vector<1x4x3xf32>
    %11 = vector.extract_strided_slice %1 {offsets = [0, 0, 7], sizes = [1, 4, 1], strides = [1, 1, 1]} : vector<1x4x32xf32> to vector<1x4x1xf32>
    %12 = vector.extract_strided_slice %0 {offsets = [0, 0, 3], sizes = [1, 4, 3], strides = [1, 1, 1]} : vector<1x4x24xf32> to vector<1x4x3xf32>
    %13 = arith.subf %12, %10 : vector<1x4x3xf32>
    %14 = arith.mulf %13, %13 : vector<1x4x3xf32>
    %15 = vector.broadcast %11 : vector<1x4x1xf32> to vector<1x4x3xf32>
    %16 = arith.mulf %14, %15 : vector<1x4x3xf32>
    %c0_8 = arith.constant 0 : index
    %c0_9 = arith.constant 0 : index
    %c3 = arith.constant 3 : index
    %17 = vector.load %arg4[%c0_8, %c0_9, %c3] : memref<1x4x24xf32, #tpu.memory_space<vmem>>, vector<1x4x3xf32>
    tpu.vector_store %arg4[%c0_8, %c0_9, %c3], %16 {strides = array<i32>} : memref<1x4x24xf32, #tpu.memory_space<vmem>>, vector<1x4x3xf32>,
    %18 = vector.extract_strided_slice %1 {offsets = [0, 0, 8], sizes = [1, 4, 3], strides = [1, 1, 1]} : vector<1x4x32xf32> to vector<1x4x3xf32>
    %19 = vector.extract_strided_slice %1 {offsets = [0, 0, 11], sizes = [1, 4, 1], strides = [1, 1, 1]} : vector<1x4x32xf32> to vector<1x4x1xf32>
    %20 = vector.extract_strided_slice %0 {offsets = [0, 0, 6], sizes = [1, 4, 3], strides = [1, 1, 1]} : vector<1x4x24xf32> to vector<1x4x3xf32>
    %21 = arith.subf %20, %18 : vector<1x4x3xf32>
    %22 = arith.mulf %21, %21 : vector<1x4x3xf32>
    %23 = vector.broadcast %19 : vector<1x4x1xf32> to vector<1x4x3xf32>
    %24 = arith.mulf %22, %23 : vector<1x4x3xf32>
    %c0_10 = arith.constant 0 : index
    %c0_11 = arith.constant 0 : index
    %c6 = arith.constant 6 : index
    %25 = vector.load %arg4[%c0_10, %c0_11, %c6] : memref<1x4x24xf32, #tpu.memory_space<vmem>>, vector<1x4x3xf32>
    tpu.vector_store %arg4[%c0_10, %c0_11, %c6], %24 {strides = array<i32>} : memref<1x4x24xf32, #tpu.memory_space<vmem>>, vector<1x4x3xf32>,
    %26 = vector.extract_strided_slice %1 {offsets = [0, 0, 12], sizes = [1, 4, 3], strides = [1, 1, 1]} : vector<1x4x32xf32> to vector<1x4x3xf32>
    %27 = vector.extract_strided_slice %1 {offsets = [0, 0, 15], sizes = [1, 4, 1], strides = [1, 1, 1]} : vector<1x4x32xf32> to vector<1x4x1xf32>
    %28 = vector.extract_strided_slice %0 {offsets = [0, 0, 9], sizes = [1, 4, 3], strides = [1, 1, 1]} : vector<1x4x24xf32> to vector<1x4x3xf32>
    %29 = arith.subf %28, %26 : vector<1x4x3xf32>
    %30 = arith.mulf %29, %29 : vector<1x4x3xf32>
    %31 = vector.broadcast %27 : vector<1x4x1xf32> to vector<1x4x3xf32>
    %32 = arith.mulf %30, %31 : vector<1x4x3xf32>
    %c0_12 = arith.constant 0 : index
    %c0_13 = arith.constant 0 : index
    %c9 = arith.constant 9 : index
    %33 = vector.load %arg4[%c0_12, %c0_13, %c9] : memref<1x4x24xf32, #tpu.memory_space<vmem>>, vector<1x4x3xf32>
    tpu.vector_store %arg4[%c0_12, %c0_13, %c9], %32 {strides = array<i32>} : memref<1x4x24xf32, #tpu.memory_space<vmem>>, vector<1x4x3xf32>,
    %34 = vector.extract_strided_slice %1 {offsets = [0, 0, 16], sizes = [1, 4, 3], strides = [1, 1, 1]} : vector<1x4x32xf32> to vector<1x4x3xf32>
    %35 = vector.extract_strided_slice %1 {offsets = [0, 0, 19], sizes = [1, 4, 1], strides = [1, 1, 1]} : vector<1x4x32xf32> to vector<1x4x1xf32>
    %36 = vector.extract_strided_slice %0 {offsets = [0, 0, 12], sizes = [1, 4, 3], strides = [1, 1, 1]} : vector<1x4x24xf32> to vector<1x4x3xf32>
    %37 = arith.subf %36, %34 : vector<1x4x3xf32>
    %38 = arith.mulf %37, %37 : vector<1x4x3xf32>
    %39 = vector.broadcast %35 : vector<1x4x1xf32> to vector<1x4x3xf32>
    %40 = arith.mulf %38, %39 : vector<1x4x3xf32>
    %c0_14 = arith.constant 0 : index
    %c0_15 = arith.constant 0 : index
    %c12 = arith.constant 12 : index
    %41 = vector.load %arg4[%c0_14, %c0_15, %c12] : memref<1x4x24xf32, #tpu.memory_space<vmem>>, vector<1x4x3xf32>
    tpu.vector_store %arg4[%c0_14, %c0_15, %c12], %40 {strides = array<i32>} : memref<1x4x24xf32, #tpu.memory_space<vmem>>, vector<1x4x3xf32>,
    %42 = vector.extract_strided_slice %1 {offsets = [0, 0, 20], sizes = [1, 4, 3], strides = [1, 1, 1]} : vector<1x4x32xf32> to vector<1x4x3xf32>
    %43 = vector.extract_strided_slice %1 {offsets = [0, 0, 23], sizes = [1, 4, 1], strides = [1, 1, 1]} : vector<1x4x32xf32> to vector<1x4x1xf32>
    %44 = vector.extract_strided_slice %0 {offsets = [0, 0, 15], sizes = [1, 4, 3], strides = [1, 1, 1]} : vector<1x4x24xf32> to vector<1x4x3xf32>
    %45 = arith.subf %44, %42 : vector<1x4x3xf32>
    %46 = arith.mulf %45, %45 : vector<1x4x3xf32>
    %47 = vector.broadcast %43 : vector<1x4x1xf32> to vector<1x4x3xf32>
    %48 = arith.mulf %46, %47 : vector<1x4x3xf32>
    %c0_16 = arith.constant 0 : index
    %c0_17 = arith.constant 0 : index
    %c15 = arith.constant 15 : index
    %49 = vector.load %arg4[%c0_16, %c0_17, %c15] : memref<1x4x24xf32, #tpu.memory_space<vmem>>, vector<1x4x3xf32>
    tpu.vector_store %arg4[%c0_16, %c0_17, %c15], %48 {strides = array<i32>} : memref<1x4x24xf32, #tpu.memory_space<vmem>>, vector<1x4x3xf32>,
    %50 = vector.extract_strided_slice %1 {offsets = [0, 0, 24], sizes = [1, 4, 3], strides = [1, 1, 1]} : vector<1x4x32xf32> to vector<1x4x3xf32>
    %51 = vector.extract_strided_slice %1 {offsets = [0, 0, 27], sizes = [1, 4, 1], strides = [1, 1, 1]} : vector<1x4x32xf32> to vector<1x4x1xf32>
    %52 = vector.extract_strided_slice %0 {offsets = [0, 0, 18], sizes = [1, 4, 3], strides = [1, 1, 1]} : vector<1x4x24xf32> to vector<1x4x3xf32>
    %53 = arith.subf %52, %50 : vector<1x4x3xf32>
    %54 = arith.mulf %53, %53 : vector<1x4x3xf32>
    %55 = vector.broadcast %51 : vector<1x4x1xf32> to vector<1x4x3xf32>
    %56 = arith.mulf %54, %55 : vector<1x4x3xf32>
    %c0_18 = arith.constant 0 : index
    %c0_19 = arith.constant 0 : index
    %c18 = arith.constant 18 : index
    %57 = vector.load %arg4[%c0_18, %c0_19, %c18] : memref<1x4x24xf32, #tpu.memory_space<vmem>>, vector<1x4x3xf32>
    tpu.vector_store %arg4[%c0_18, %c0_19, %c18], %56 {strides = array<i32>} : memref<1x4x24xf32, #tpu.memory_space<vmem>>, vector<1x4x3xf32>,
    %58 = vector.extract_strided_slice %1 {offsets = [0, 0, 28], sizes = [1, 4, 3], strides = [1, 1, 1]} : vector<1x4x32xf32> to vector<1x4x3xf32>
    %59 = vector.extract_strided_slice %1 {offsets = [0, 0, 31], sizes = [1, 4, 1], strides = [1, 1, 1]} : vector<1x4x32xf32> to vector<1x4x1xf32>
    %60 = vector.extract_strided_slice %0 {offsets = [0, 0, 21], sizes = [1, 4, 3], strides = [1, 1, 1]} : vector<1x4x24xf32> to vector<1x4x3xf32>
    %61 = arith.subf %60, %58 : vector<1x4x3xf32>
    %62 = arith.mulf %61, %61 : vector<1x4x3xf32>
    %63 = vector.broadcast %59 : vector<1x4x1xf32> to vector<1x4x3xf32>
    %64 = arith.mulf %62, %63 : vector<1x4x3xf32>
    %c0_20 = arith.constant 0 : index
    %c0_21 = arith.constant 0 : index
    %c21 = arith.constant 21 : index
    %65 = vector.load %arg4[%c0_20, %c0_21, %c21] : memref<1x4x24xf32, #tpu.memory_space<vmem>>, vector<1x4x3xf32>
    tpu.vector_store %arg4[%c0_20, %c0_21, %c21], %64 {strides = array<i32>} : memref<1x4x24xf32, #tpu.memory_space<vmem>>, vector<1x4x3xf32>,
    return
  }
  func.func @transform_0(%arg0: i32, %arg1: i32) -> (i32, i32, i32) {
    %c0_i32 = arith.constant 0 : i32
    %c0_i32_0 = arith.constant 0 : i32
    return %arg0, %arg1, %c0_i32 : i32, i32, i32
  }
  func.func @transform_1(%arg0: i32, %arg1: i32) -> (i32, i32, i32) {
    %c0_i32 = arith.constant 0 : i32
    %c0_i32_0 = arith.constant 0 : i32
    return %arg0, %arg1, %c0_i32 : i32, i32, i32
  }
  func.func @transform_2(%arg0: i32, %arg1: i32) -> (i32, i32, i32) {
    %c0_i32 = arith.constant 0 : i32
    %c0_i32_0 = arith.constant 0 : i32
    return %arg0, %arg1, %c0_i32 : i32, i32, i32
  }
}

</mosaic_0001>

<llo_original>
// kernel: tpu_custom_call.1
$region0: #{tpu_custom_call.1}
  #allocation0 [shape = 'u32[]', space=smem, size = 0x4, offset = 0x4, fixed_abs, tag = 'smem constant byte address 0x4 - core index']
  #allocation1 [shape = 'u32[144,128]{1,0:T(1,128)}', space=vmem, size = 0x12000, scoped, tag = 'internal scratch']
  %s0 = inlined_call_operand.hbm [shape: f32[2,4,24], index: 0, kind: input, shape index: {}]
  %s1 = inlined_call_operand.hbm [shape: f32[2,4,32], index: 1, kind: input, shape index: {}]
  %s2 = inlined_call_operand.hbm [shape: f32[2,4,24], index: 2, kind: output, shape index: {}]
  %s3 = sld [smem:[#allocation0]]
  $region49: #{tpu_custom_call.1} parent=0
    _
  %s5 = ssub.s32 1, %s3
  %s6 = scalar_select 0, %s5, %s3
  $region1: #{tpu_custom_call.1} parent=0
    #allocation2 [shape = 'u8[4096]{0}', space=vmem, size = 0x1000, scoped, tag = 'input window, operand 0']
    #allocation3 [shape = 's32[2]{0}', space=sflag, size = 0x8, scoped, tag = 'scoped memory for tpu_custom_call.1']
    #allocation4 [shape = 's32[2]{0}', space=sflag, size = 0x8, scoped, tag = 'scoped memory for tpu_custom_call.1']
    #allocation5 [shape = 'u8[4096]{0}', space=vmem, size = 0x1000, scoped, tag = 'input window, operand 1']
    #allocation6 [shape = 's32[2]{0}', space=sflag, size = 0x8, scoped, tag = 'scoped memory for tpu_custom_call.1']
    #allocation7 [shape = 'u8[4096]{0}', space=vmem, size = 0x1000, scoped, tag = 'output window, operand 0']
    %7 = vsyncpa [#allocation3], 0
    %s8 = scalar_lea.sflag [#allocation3], 1
    %9 = vsyncpa %s8, 0
    %10 = vsyncpa [#allocation6], 0
    %s11 = scalar_lea.sflag [#allocation6], 1
    %12 = vsyncpa %s11, 0
    %13 = vsyncpa [#allocation4], 0
    %s14 = scalar_lea.sflag [#allocation4], 1
    %15 = vsyncpa %s14, 0
    loop: start=0, step=1, limit=4
    $region2: #{tpu_custom_call.1} parent=1 // loop_pre_header
      _
    $region3: #{tpu_custom_call.1} parent=1 // loop_header
      %s17 = sphi 0, %s21
      %p18 = scmp.ge.s32.totalorder %s17, 4
      %s24 = sphi 0, %s36
      %s25 = sphi 0, %s32
      %s26 = sphi 0, %s24
      %s27 = sphi 0, %s25
      %s28 = sphi 0, %s26
      %s29 = sphi 0, %s27
      %s41 = sphi 0, %s43
      %s44 = sphi 0, %s41
      %s45 = sphi 0, %s44
      %s61 = sphi 0, %s45
      %s69 = sphi 0, %s71
      %s72 = sphi 0, %s69
      %s73 = sphi 0, %s72
      %s89 = sphi 0, %s73
      %s97 = sphi 0, %s99
      %s100 = sphi 0, %s97
      %s101 = sphi 0, %s100
      %s117 = sphi 0, %s101
    $region4: #{tpu_custom_call.1} parent=1 // loop_header_branch
      %20 = sbr.rel (%p18) target = $region8
    $region5: #{tpu_custom_call.1} parent=1 // loop_body
      %s22 = ssub.s32 %s17, 1
      %s23 = ssub.s32 %s17, 2
      %s30 = sadd.s32 1, %s25
      %p31 = scmp.ge.s32.totalorder %s30, 1
      %s32 = scalar_select %p31, 0, %s30
      %s33 = sadd.s32 1, %s24
      %s34 = scalar_select %p31, %s33, %s24
      %p35 = scmp.ge.s32.totalorder %s34, 2
      %s36 = scalar_select %p35, 0, %s34
      %s37 = ssub.s32 %s24, %s36
      %s38 = ssub.s32 %s25, %s32
      %s39 = sor.u32 %s37, %s38
      %p40 = scmp.eq.s32.totalorder %s39, 0
      %s42 = sadd.s32 %s41, 1
      %s43 = scalar_select %p40, %s41, %s42
      %p46 = pneg %p40
      %p47 = scmp.eq.s32.totalorder %s17, 1
      %p48 = por %p46, %p47
      %p49 = scmp.ne.s32.totalorder %s41, %s44
      %p50 = scmp.eq.s32.totalorder %s17, 0
      %p51 = por %p49, %p50
      %p52 = scmp.ne.s32.totalorder %s41, %s44
      %p53 = scmp.eq.s32.totalorder %s22, 1
      %p54 = por %p52, %p53
      %p55 = scmp.ne.s32.totalorder %s44, %s45
      %p56 = scmp.eq.s32.totalorder %s22, 0
      %p57 = por %p55, %p56
      %p58 = scmp.ne.s32.totalorder %s44, %s45
      %p59 = scmp.eq.s32.totalorder %s23, 1
      %p60 = por %p58, %p59
      %p62 = scmp.ne.s32.totalorder %s45, %s61
      %p63 = scmp.eq.s32.totalorder %s23, 0
      %p64 = por %p62, %p63
      %s65 = ssub.s32 %s24, %s36
      %s66 = ssub.s32 %s25, %s32
      %s67 = sor.u32 %s65, %s66
      %p68 = scmp.eq.s32.totalorder %s67, 0
      %s70 = sadd.s32 %s69, 1
      %s71 = scalar_select %p68, %s69, %s70
      %p74 = pneg %p68
      %p75 = scmp.eq.s32.totalorder %s17, 1
      %p76 = por %p74, %p75
      %p77 = scmp.ne.s32.totalorder %s69, %s72
      %p78 = scmp.eq.s32.totalorder %s17, 0
      %p79 = por %p77, %p78
      %p80 = scmp.ne.s32.totalorder %s69, %s72
      %p81 = scmp.eq.s32.totalorder %s22, 1
      %p82 = por %p80, %p81
      %p83 = scmp.ne.s32.totalorder %s72, %s73
      %p84 = scmp.eq.s32.totalorder %s22, 0
      %p85 = por %p83, %p84
      %p86 = scmp.ne.s32.totalorder %s72, %s73
      %p87 = scmp.eq.s32.totalorder %s23, 1
      %p88 = por %p86, %p87
      %p90 = scmp.ne.s32.totalorder %s73, %s89
      %p91 = scmp.eq.s32.totalorder %s23, 0
      %p92 = por %p90, %p91
      %s93 = ssub.s32 %s24, %s36
      %s94 = ssub.s32 %s25, %s32
      %s95 = sor.u32 %s93, %s94
      %p96 = scmp.eq.s32.totalorder %s95, 0
      %s98 = sadd.s32 %s97, 1
      %s99 = scalar_select %p96, %s97, %s98
      %p102 = pneg %p96
      %p103 = scmp.eq.s32.totalorder %s17, 1
      %p104 = por %p102, %p103
      %p105 = scmp.ne.s32.totalorder %s97, %s100
      %p106 = scmp.eq.s32.totalorder %s17, 0
      %p107 = por %p105, %p106
      %p108 = scmp.ne.s32.totalorder %s97, %s100
      %p109 = scmp.eq.s32.totalorder %s22, 1
      %p110 = por %p108, %p109
      %p111 = scmp.ne.s32.totalorder %s100, %s101
      %p112 = scmp.eq.s32.totalorder %s22, 0
      %p113 = por %p111, %p112
      %p114 = scmp.ne.s32.totalorder %s100, %s101
      %p115 = scmp.eq.s32.totalorder %s23, 1
      %p116 = por %p114, %p115
      %p118 = scmp.ne.s32.totalorder %s101, %s117
      %p119 = scmp.eq.s32.totalorder %s23, 0
      %p120 = por %p118, %p119
      %p121 = scmp.le.s32.totalorder 1, %s17
      %p122 = scmp.lt.s32.totalorder %s17, 3
      %p123 = pnand %p121, %p122
      %p124 = pneg %p123
      // Predicated region
      $region9: #{tpu_custom_call.1} parent=5 // pred_check
        _
      $region10: #{tpu_custom_call.1} parent=5 // pred_check_branch
        %126 = sbr.rel (%p123) target = $region12
      $region11: #{tpu_custom_call.1} parent=5 // pred_region
        %s127 = ssub.s32 %s17, 1
      $region12: #{tpu_custom_call.1} parent=5 // pred_fallthru
        _
      %p128 = scmp.lt.s32.totalorder %s17, 2
      // Predicated region
      $region13: #{tpu_custom_call.1} parent=5 // pred_check
        %p129 = pneg %p128
      $region14: #{tpu_custom_call.1} parent=5 // pred_check_branch
        %131 = sbr.rel (%p129) target = $region16
      $region15: #{tpu_custom_call.1} parent=5 // pred_region
        // Predicated region
        $region17: #{tpu_custom_call.1} parent=15 // pred_check
          %p132 = pneg %p51
        $region18: #{tpu_custom_call.1} parent=15 // pred_check_branch
          %134 = sbr.rel (%p132) target = $region20
        $region19: #{tpu_custom_call.1} parent=15 // pred_region
          %s135 = sand.u32 %s41, 1
          %s136 = scalar_lea.sflag [#allocation3], %s135
          %s137 = sand.u32 %s41, 1
          %s138 = smul.addr %s137, 4
          %s139 = scalar_lea.vmem [#allocation2], %s138
          %s141 = ssub.s32 64, 64
          %142 = vsyncadd %s136, %s141
          %s143 = sadd.s32 %s25, %s24
          %s144 = smul.addr %s143, 64
          %s145 = scalar_lea.hbm %s0, %s144
          %s147 = sshll.u32 %s139, 4
          %s148 = int_to_ptr.vmem [resolvable:$true] %s147
          %150 = dma.hbm_to_vmem [thread:$0]  %s145, 64, %s148, %s136
        $region20: #{tpu_custom_call.1} parent=15 // pred_fallthru
          _
        // Predicated region
        $region21: #{tpu_custom_call.1} parent=15 // pred_check
          %p151 = pneg %p79
        $region22: #{tpu_custom_call.1} parent=15 // pred_check_branch
          %153 = sbr.rel (%p151) target = $region24
        $region23: #{tpu_custom_call.1} parent=15 // pred_region
          %s154 = sand.u32 %s69, 1
          %s155 = scalar_lea.sflag [#allocation6], %s154
          %s156 = sand.u32 %s69, 1
          %s157 = smul.addr %s156, 4
          %s158 = scalar_lea.vmem [#allocation5], %s157
          %s160 = ssub.s32 64, 64
          %161 = vsyncadd %s155, %s160
          %s162 = sadd.s32 %s25, %s24
          %s163 = smul.addr %s162, 64
          %s164 = scalar_lea.hbm %s1, %s163
          %s166 = sshll.u32 %s158, 4
          %s167 = int_to_ptr.vmem [resolvable:$true] %s166
          %169 = dma.hbm_to_vmem [thread:$0]  %s164, 64, %s167, %s155
        $region24: #{tpu_custom_call.1} parent=15 // pred_fallthru
          _
      $region16: #{tpu_custom_call.1} parent=5 // pred_fallthru
        _
      %p170 = scmp.le.s32.totalorder 1, %s17
      %p171 = scmp.lt.s32.totalorder %s17, 3
      %p172 = pnand %p170, %p171
      %p173 = pneg %p172
      // Predicated region
      $region25: #{tpu_custom_call.1} parent=5 // pred_check
        _
      $region26: #{tpu_custom_call.1} parent=5 // pred_check_branch
        %175 = sbr.rel (%p172) target = $region28
      $region27: #{tpu_custom_call.1} parent=5 // pred_region
        %s176 = ssub.s32 %s17, 1
        %s177 = sand.u32 %s44, 1
        %s178 = scalar_lea.sflag [#allocation3], %s177
        %s179 = sand.u32 %s44, 1
        %s180 = smul.addr %s179, 4
        %s181 = scalar_lea.vmem [#allocation2], %s180
        // Predicated region
        $region29: #{tpu_custom_call.1} parent=27 // pred_check
          %p182 = pneg %p57
        $region30: #{tpu_custom_call.1} parent=27 // pred_check_branch
          %184 = sbr.rel (%p182) target = $region32
        $region31: #{tpu_custom_call.1} parent=27 // pred_region
          %185 = dma.done %s178, 64
        $region32: #{tpu_custom_call.1} parent=27 // pred_fallthru
          _
        %s186 = sand.u32 %s72, 1
        %s187 = scalar_lea.sflag [#allocation6], %s186
        %s188 = sand.u32 %s72, 1
        %s189 = smul.addr %s188, 4
        %s190 = scalar_lea.vmem [#allocation5], %s189
        // Predicated region
        $region33: #{tpu_custom_call.1} parent=27 // pred_check
          %p191 = pneg %p85
        $region34: #{tpu_custom_call.1} parent=27 // pred_check_branch
          %193 = sbr.rel (%p191) target = $region36
        $region35: #{tpu_custom_call.1} parent=27 // pred_region
          %194 = dma.done %s187, 64
        $region36: #{tpu_custom_call.1} parent=27 // pred_fallthru
          _
        %s195 = sand.u32 %s44, 1
        %s196 = scalar_lea.sflag [#allocation3], %s195
        %s197 = sand.u32 %s44, 1
        %s198 = smul.addr %s197, 4
        %s199 = scalar_lea.vmem [#allocation2], %s198
        %p200 = pneg %p57
        %p201 = pneg %p54
        %s202 = sand.u32 %s72, 1
        %s203 = scalar_lea.sflag [#allocation6], %s202
        %s204 = sand.u32 %s72, 1
        %s205 = smul.addr %s204, 4
        %s206 = scalar_lea.vmem [#allocation5], %s205
        %p207 = pneg %p85
        %p208 = pneg %p82
        %p209 = pneg %p113
        %p210 = pneg %p110
        %s211 = sand.u32 %s100, 1
        %s212 = scalar_lea.sflag [#allocation4], %s211
        %s213 = sand.u32 %s100, 1
        %s214 = smul.addr %s213, 4
        %s215 = scalar_lea.vmem [#allocation7], %s214
        %v216 = vld [vmem:[%s181] sm:$0xf]
        %v217 = vld [vmem:[%s190] sm:$0xf]
        %v218 = vsub.f32 %v216, %v217
        %v219 = vmul.f32 %v218, %v218
        %221 = vset.pattern.permute.xlu0 3
        %222 = vperm.xlu0 %221, %v217
        %v223 = vpop.permute.xlu0 %222
        %v225 = vmul.f32 %v219, %v223
        %vm226 = vcmask 19456
        %227 = vst.msk [vmem:[%s215] sm:$0xf] %vm226, %v225
        %228 = vrot.lane.b32.xlu0 %v217, 127
        %v229 = vpop.permute.xlu0 %228
        %v231 = vsub.f32 %v216, %v229
        %v232 = vmul.f32 %v231, %v231
        %233 = vset.pattern.permute.xlu0 7
        %234 = vperm.xlu0 %233, %v217
        %v235 = vpop.permute.xlu0 %234
        %v237 = vmul.f32 %v232, %v235
        %vm238 = vcmask 44056
        %239 = vst.msk [vmem:[%s215] sm:$0xf] %vm238, %v237
        %240 = vrot.lane.b32.xlu0 %v217, 126
        %v241 = vpop.permute.xlu0 %240
        %v243 = vsub.f32 %v216, %v241
        %v244 = vmul.f32 %v243, %v243
        %245 = vset.pattern.permute.xlu0 11
        %246 = vperm.xlu0 %245, %v217
        %v247 = vpop.permute.xlu0 %246
        %v249 = vmul.f32 %v244, %v247
        %vm250 = vcmask 68656
        %251 = vst.msk [vmem:[%s215] sm:$0xf] %vm250, %v249
        %252 = vrot.lane.b32.xlu0 %v217, 125
        %v253 = vpop.permute.xlu0 %252
        %v255 = vsub.f32 %v216, %v253
        %v256 = vmul.f32 %v255, %v255
        %257 = vset.pattern.permute.xlu0 15
        %258 = vperm.xlu0 %257, %v217
        %v259 = vpop.permute.xlu0 %258
        %v261 = vmul.f32 %v256, %v259
        %vm262 = vcmask 93256
        %263 = vst.msk [vmem:[%s215] sm:$0xf] %vm262, %v261
        %264 = vrot.lane.b32.xlu0 %v217, 124
        %v265 = vpop.permute.xlu0 %264
        %v267 = vsub.f32 %v216, %v265
        %v268 = vmul.f32 %v267, %v267
        %269 = vset.pattern.permute.xlu0 19
        %270 = vperm.xlu0 %269, %v217
        %v271 = vpop.permute.xlu0 %270
        %v273 = vmul.f32 %v268, %v271
        %vm274 = vcmask 117856
        %275 = vst.msk [vmem:[%s215] sm:$0xf] %vm274, %v273
        %276 = vrot.lane.b32.xlu0 %v217, 123
        %v277 = vpop.permute.xlu0 %276
        %v279 = vsub.f32 %v216, %v277
        %v280 = vmul.f32 %v279, %v279
        %281 = vset.pattern.permute.xlu0 23
        %282 = vperm.xlu0 %281, %v217
        %v283 = vpop.permute.xlu0 %282
        %v285 = vmul.f32 %v280, %v283
        %vm286 = vcmask 142456
        %287 = vst.msk [vmem:[%s215] sm:$0xf] %vm286, %v285
        %288 = vrot.lane.b32.xlu0 %v217, 122
        %v289 = vpop.permute.xlu0 %288
        %v291 = vsub.f32 %v216, %v289
        %v292 = vmul.f32 %v291, %v291
        %293 = vset.pattern.permute.xlu0 27
        %294 = vperm.xlu0 %293, %v217
        %v295 = vpop.permute.xlu0 %294
        %v297 = vmul.f32 %v292, %v295
        %vm298 = vcmask 167056
        %299 = vst.msk [vmem:[%s215] sm:$0xf] %vm298, %v297
        %300 = vrot.lane.b32.xlu0 %v217, 121
        %v301 = vpop.permute.xlu0 %300
        %v303 = vsub.f32 %v216, %v301
        %v304 = vmul.f32 %v303, %v303
        %305 = vset.pattern.permute.xlu0 31
        %306 = vperm.xlu0 %305, %v217
        %v307 = vpop.permute.xlu0 %306
        %v309 = vmul.f32 %v304, %v307
        %vm310 = vcmask 191656
        %311 = vst.msk [vmem:[%s215] sm:$0xf] %vm310, %v309
        %s312 = sand.u32 %s100, 1
        %s313 = scalar_lea.sflag [#allocation4], %s312
        %s314 = sand.u32 %s100, 1
        %s315 = smul.addr %s314, 4
        %s316 = scalar_lea.vmem [#allocation7], %s315
        // Predicated region
        $region37: #{tpu_custom_call.1} parent=27 // pred_check
          %p317 = pneg %p110
        $region38: #{tpu_custom_call.1} parent=27 // pred_check_branch
          %319 = sbr.rel (%p317) target = $region40
        $region39: #{tpu_custom_call.1} parent=27 // pred_region
          %s321 = ssub.s32 64, 64
          %322 = vsyncadd %s313, %s321
          %s323 = sadd.s32 %s27, %s26
          %s324 = smul.addr %s323, 64
          %s325 = scalar_lea.hbm %s2, %s324
          %s327 = sshll.u32 %s316, 4
          %s328 = int_to_ptr.vmem [resolvable:$true] %s327
          %330 = dma.vmem_to_hbm [thread:$0]  %s328, 64, %s325, %s313
        $region40: #{tpu_custom_call.1} parent=27 // pred_fallthru
          _
      $region28: #{tpu_custom_call.1} parent=5 // pred_fallthru
        _
      %p331 = scmp.le.s32.totalorder 2, %s17
      // Predicated region
      $region41: #{tpu_custom_call.1} parent=5 // pred_check
        %p332 = pneg %p331
      $region42: #{tpu_custom_call.1} parent=5 // pred_check_branch
        %334 = sbr.rel (%p332) target = $region44
      $region43: #{tpu_custom_call.1} parent=5 // pred_region
        %s335 = ssub.s32 %s17, 2
        // Predicated region
        $region45: #{tpu_custom_call.1} parent=43 // pred_check
          %p336 = pneg %p116
        $region46: #{tpu_custom_call.1} parent=43 // pred_check_branch
          %338 = sbr.rel (%p336) target = $region48
        $region47: #{tpu_custom_call.1} parent=43 // pred_region
          %s339 = sand.u32 %s101, 1
          %s340 = scalar_lea.sflag [#allocation4], %s339
          %s341 = sand.u32 %s101, 1
          %s342 = smul.addr %s341, 4
          %s343 = scalar_lea.vmem [#allocation7], %s342
          %344 = dma.done %s340, 64
        $region48: #{tpu_custom_call.1} parent=43 // pred_fallthru
          _
      $region44: #{tpu_custom_call.1} parent=5 // pred_fallthru
        _
    $region6: #{tpu_custom_call.1} parent=1 // loop_footer
      %s21 = sadd.s32 1, %s17
    $region7: #{tpu_custom_call.1} parent=1 // loop_footer_branch
      %16 = sbr.rel target = $region3
    $region8: #{tpu_custom_call.1} parent=1 // loop_exit
      _
    %345 = vsyncpa [#allocation3], 1
    %s346 = scalar_lea.sflag [#allocation3], 1
    %347 = vsyncpa %s346, 1
    %348 = vsyncpa [#allocation6], 1
    %s349 = scalar_lea.sflag [#allocation6], 1
    %350 = vsyncpa %s349, 1
    %351 = vsyncpa [#allocation4], 1
    %s352 = scalar_lea.sflag [#allocation4], 1
    %353 = vsyncpa %s352, 1

</llo_original>
